<compile_context>
chip_gen: v7x
topology: tpu7x:2x2x1
jax: 0.10.0
libtpu: 0.0.40
codegen_flags: <defaults>
</compile_context>

<pallas_src>
import functools
import math

import numpy as np

import jax
import jax.numpy as jnp
from jax.experimental import pallas as pl
from jax.experimental.pallas import tpu as pltpu


_MIB = 1024 * 1024


# ----------------------------------------------------------------------------
# Generation-aware configuration
# ----------------------------------------------------------------------------
@functools.lru_cache(maxsize=None)
def _tpu_config():
    """Tile sizes / VMEM limits keyed on the VMEM capacity of the local TPU."""
    try:
        vmem_cap = int(pltpu.get_tpu_info().vmem_capacity_bytes)
    except Exception:
        vmem_cap = None
    if vmem_cap is None:
        # Unknown platform: conservative defaults that always fit.
        return {"tm": 512, "tn": 512, "tk": 512, "align": 128,
                "vmem_limit": 32 * _MIB}
    if vmem_cap >= 96 * _MIB:
        # v5e / v6e: 128 MiB VMEM per TensorCore -> big MXU-bound tiles.
        return {"tm": 1024, "tn": 1024, "tk": 512, "align": 256,
                "vmem_limit": 80 * _MIB}
    # v7x: 64 MiB VMEM per TensorCore, ~3.2 TB/s HBM -> 768 tiles already MXU-bound.
    return {"tm": 768, "tn": 768, "tk": 512, "align": 256,
            "vmem_limit": 44 * _MIB}


# ----------------------------------------------------------------------------
# Kernels
# ----------------------------------------------------------------------------
def _mm_kernel_direct(a_ref, b_ref, o_ref, *, acc_dtype):
    """Single-K-stripe path: compute straight into the output block."""
    a = a_ref[...]
    b = b_ref[...]
    if a_ref.shape[0] == 1:
        out = jnp.dot(a[0], b[0], preferred_element_type=acc_dtype)
        o_ref[0] = out.astype(o_ref.dtype)
    else:
        out = jnp.einsum("bmk,bkn->bmn", a, b, preferred_element_type=acc_dtype)
        o_ref[...] = out.astype(o_ref.dtype)


def _mm_kernel_acc_inplace(a_ref, b_ref, o_ref):
    """Multi-K-tile path, out_dtype == accumulator dtype: accumulate directly
    into the VMEM-resident output block (no scratch, no final cast pass)."""
    k = pl.program_id(3)

    @pl.when(k == 0)
    def _():
        o_ref[...] = jnp.zeros_like(o_ref)

    a = a_ref[...]
    b = b_ref[...]
    if a_ref.shape[0] == 1:
        o_ref[0] += jnp.dot(a[0], b[0], preferred_element_type=o_ref.dtype)
    else:
        o_ref[...] += jnp.einsum("bmk,bkn->bmn", a, b,
                                 preferred_element_type=o_ref.dtype)


def _mm_kernel_acc_scratch(a_ref, b_ref, o_ref, acc_ref):
    """Multi-K-tile path with a separate f32/i32 accumulator (narrow outputs)."""
    k = pl.program_id(3)

    @pl.when(k == 0)
    def _():
        acc_ref[...] = jnp.zeros_like(acc_ref)

    a = a_ref[...]
    b = b_ref[...]
    if a_ref.shape[0] == 1:
        acc_ref[0] += jnp.dot(a[0], b[0], preferred_element_type=acc_ref.dtype)
    else:
        acc_ref[...] += jnp.einsum("bmk,bkn->bmn", a, b,
                                   preferred_element_type=acc_ref.dtype)

    @pl.when(k == pl.num_programs(3) - 1)
    def _():
        o_ref[...] = acc_ref[...].astype(o_ref.dtype)


# ----------------------------------------------------------------------------
# Tiling helpers
# ----------------------------------------------------------------------------
def _choose_tile(dim, preferred, align):
    """Return (tile, padded_dim).  Prefers exact divisors (no padding glue)."""
    if dim <= preferred:
        return dim, dim          # full-dim block: always legal, no padding

    # 1) Largest aligned tile <= preferred that divides dim exactly (no padding).
    for step in ((align, 128) if align > 128 else (align,)):
        t = (preferred // step) * step
        while t >= step:
            if dim % t == 0:
                if 2 * t >= preferred:
                    return t, dim
                break
            t -= step

    # 2) Pad up to a multiple of `preferred` when the waste is small (<=12.5%).
    padded_pref = -(-dim // preferred) * preferred
    if padded_pref - dim <= dim // 8:
        return preferred, padded_pref

    # 3) Exact (possibly smaller) 128-aligned divisor: still no padding glue.
    t = (preferred // 128) * 128
    while t >= 128:
        if dim % t == 0:
            return t, dim
        t -= 128

    # 4) Last resort: minimal 128-padding + largest 128-aligned tile dividing it.
    padded = -(-dim // 128) * 128
    t = (preferred // 128) * 128
    while padded % t != 0:
        t -= 128
    return t, padded


def _pick_batch_block(B, tm, tn, tk, a_bytes, b_bytes, o_bytes, acc_bytes,
                      vmem_limit):
    """Pack several batch entries per grid step when the M/N tiles are tiny."""
    if min(tm, tn) >= 256:
        return 1  # big matmul: batch packing buys nothing, save the VMEM
    per_b = (2 * tm * tk * a_bytes          # A tile, double-buffered
             + 2 * tk * tn * b_bytes        # B tile, double-buffered
             + 2 * tm * tn * o_bytes        # output tile, double-buffered
             + tm * tn * acc_bytes)         # (possible) accumulator
    budget = min(12 * _MIB, vmem_limit // 3)
    max_bb = max(1, budget // max(per_b, 1))
    bb = 1
    for d in range(1, int(min(B, max_bb, 1024)) + 1):
        if B % d == 0:
            bb = d
    return bb


# ----------------------------------------------------------------------------
# Core Pallas path: (B, M, K) @ (B, K, N) -> (B, M, N)
# ----------------------------------------------------------------------------
def _matmul3d(a, b, cfg):
    B, M, K = a.shape
    _, _, N = b.shape
    out_dtype = jnp.result_type(a.dtype, b.dtype)
    acc_dtype = (jnp.int32 if jnp.issubdtype(out_dtype, jnp.integer)
                 else jnp.float32)
    # TODO(synk): on v7x the MXU has no integer path; integer matmuls here are
    # correct but cannot reach MXU peak on that generation.

    align = cfg["align"]
    vmem_limit = cfg["vmem_limit"]
    budget = vmem_limit - 6 * _MIB

    tm, Mp = _choose_tile(M, cfg["tm"], align)
    tn, Np = _choose_tile(N, cfg["tn"], align)

    a_bytes = a.dtype.itemsize
    b_bytes = b.dtype.itemsize
    o_bytes = np.dtype(out_dtype).itemsize
    acc_bytes = np.dtype(acc_dtype).itemsize

    inplace_acc = np.dtype(out_dtype) == np.dtype(acc_dtype)

    def footprint(tk_, with_scratch):
        f = (2 * tm * tk_ * a_bytes + 2 * tk_ * tn * b_bytes
             + 2 * tm * tn * o_bytes)
        if with_scratch:
            f += tm * tn * acc_bytes
        return f

    # Prefer a single full-K stripe (n_k == 1): the A stripe stays VMEM-resident
    # across the whole N sweep, no accumulator, no zero-init / final-cast pass.
    if footprint(K, False) <= budget:
        tk, Kp = K, K
    else:
        tk, Kp = _choose_tile(K, cfg["tk"], 128)
    n_k = Kp // tk

    # Zero-pad rounded-up dims (K padding contributes nothing to the contraction;
    # M/N padding is sliced off below).  With divisor-first tiling this is
    # usually a no-op, avoiding extra HBM read/write passes.
    if Mp != M or Kp != K:
        a = jnp.pad(a, ((0, 0), (0, Mp - M), (0, Kp - K)))
    if Kp != K or Np != N:
        b = jnp.pad(b, ((0, 0), (0, Kp - K), (0, Np - N)))

    bb = _pick_batch_block(B, tm, tn, tk, a_bytes, b_bytes, o_bytes,
                           acc_bytes, vmem_limit)
    # TODO(synk): for tiny-M/N batched shapes (attention scores) the stored last
    # dim can be < 128 -> masked vst; a transposed (b, n, m) store layout would
    # be lane-dense but is not implemented here.

    if n_k == 1:
        grid = (B // bb, Mp // tm, Np // tn)
        in_specs = [
            pl.BlockSpec((bb, tm, Kp), lambda bi, i, j: (bi, i, 0)),
            pl.BlockSpec((bb, Kp, tn), lambda bi, i, j: (bi, 0, j)),
        ]
        out_spec = pl.BlockSpec((bb, tm, tn), lambda bi, i, j: (bi, i, j))
        kernel = functools.partial(_mm_kernel_direct, acc_dtype=acc_dtype)
        scratch_shapes = []
        dim_sem = ("parallel", "parallel", "parallel")
        a_reads = 1
    else:
        grid = (B // bb, Mp // tm, Np // tn, n_k)
        in_specs = [
            pl.BlockSpec((bb, tm, tk), lambda bi, i, j, k: (bi, i, k)),
            pl.BlockSpec((bb, tk, tn), lambda bi, i, j, k: (bi, k, j)),
        ]
        out_spec = pl.BlockSpec((bb, tm, tn), lambda bi, i, j, k: (bi, i, j))
        if inplace_acc:
            kernel = _mm_kernel_acc_inplace
            scratch_shapes = []
        else:
            kernel = _mm_kernel_acc_scratch
            scratch_shapes = [pltpu.VMEM((bb, tm, tn), acc_dtype)]
        dim_sem = ("parallel", "parallel", "parallel", "arbitrary")
        a_reads = Np // tn

    cost = pl.CostEstimate(
        flops=2 * B * Mp * Np * Kp,
        transcendentals=0,
        bytes_accessed=(B * Mp * Kp * a_bytes * a_reads
                        + B * Kp * Np * b_bytes * (Mp // tm)
                        + B * Mp * Np * o_bytes),
    )

    out = pl.pallas_call(
        kernel,
        out_shape=jax.ShapeDtypeStruct((B, Mp, Np), out_dtype),
        grid_spec=pltpu.PrefetchScalarGridSpec(
            num_scalar_prefetch=0,
            grid=grid,
            in_specs=in_specs,
            out_specs=out_spec,
            scratch_shapes=scratch_shapes,
        ),
        compiler_params=pltpu.CompilerParams(
            dimension_semantics=dim_sem,
            vmem_limit_bytes=vmem_limit,
        ),
        cost_estimate=cost,
    )(a, b)

    if Mp != M or Np != N:
        out = out[:, :M, :N]
    return out


# ----------------------------------------------------------------------------
# torch.matmul semantics wrapper (vector / matrix / batched broadcasting)
# ----------------------------------------------------------------------------
@jax.jit
def pallas_matmul(a, b):
    a = jnp.asarray(a)
    b = jnp.asarray(b)

    # 1-D promotion per torch.matmul rules (glue, not hot path).
    squeeze_m = a.ndim == 1
    squeeze_n = b.ndim == 1
    if squeeze_m:
        a = a[None, :]
    if squeeze_n:
        b = b[:, None]

    batch_shape = jnp.broadcast_shapes(a.shape[:-2], b.shape[:-2])
    M, K = a.shape[-2], a.shape[-1]
    K2, N = b.shape[-2], b.shape[-1]
    assert K == K2, f"matmul dim mismatch: {a.shape} @ {b.shape}"

    out_dtype = jnp.result_type(a.dtype, b.dtype)
    B = math.prod(batch_shape) if batch_shape else 1

    if B == 0 or M == 0 or N == 0 or K == 0:
        # Degenerate / empty shapes: torch.matmul returns zeros (or empty).
        out = jnp.zeros(batch_shape + (M, N), out_dtype)
    else:
        cfg = _tpu_config()
        a_batch = math.prod(a.shape[:-2])
        b_batch = math.prod(b.shape[:-2])
        if b_batch == 1 and a_batch == B:
            # Shared RHS (activations @ weights): fold the batch into M.  This
            # avoids materializing B broadcast copies of the weights in HBM and
            # turns B small matmuls into one large MXU-friendly matmul.
            a2 = a.reshape((B * M, K))
            b2 = b.reshape((K, N))
            out = _matmul3d(a2[None], b2[None], cfg)[0]
            out = out.reshape(batch_shape + (M, N))
        else:
            # Genuinely batched matmul (both operands carry batch dims).
            # TODO(synk): the a_batch == 1 case still materializes B broadcast
            # copies of the (usually small) LHS; a transposed fold would avoid it.
            a_bc = jnp.broadcast_to(a, batch_shape + (M, K)).reshape((B, M, K))
            b_bc = jnp.broadcast_to(b, batch_shape + (K, N)).reshape((B, K, N))
            out = _matmul3d(a_bc, b_bc, cfg).reshape(batch_shape + (M, N))

    if squeeze_m:
        out = jnp.squeeze(out, axis=-2)
    if squeeze_n:
        out = jnp.squeeze(out, axis=-1)
    return out


if __name__ == "__main__":
    key = jax.random.PRNGKey(0)
    k1, k2, k3, k4, k5, k6 = jax.random.split(key, 6)

    ok = True

    # Batched attention-score case: (B, H, S, D) x (B, H, D, S).
    B, H, S, D = 2, 4, 8, 32
    q = jax.random.normal(k1, (B, H, S, D), dtype=jnp.float32)
    kt = jax.random.normal(k2, (B, H, D, S), dtype=jnp.float32)
    out_batched = pallas_matmul(q, kt)
    jax.block_until_ready(out_batched)
    ok &= bool(jnp.allclose(out_batched, jnp.matmul(q, kt), atol=1e-5, rtol=1e-5))

    # Activations @ shared weights: (B, H, S, D) x (D, N)  — batch-fold path.
    w = jax.random.normal(k3, (D, 48), dtype=jnp.float32)
    out_fold = pallas_matmul(q, w)
    jax.block_until_ready(out_fold)
    ok &= bool(jnp.allclose(out_fold, jnp.matmul(q, w), atol=1e-5, rtol=1e-5))

    # Plain 2-D case: (M, K) x (K, N).
    x2d = jax.random.normal(k4, (16, 32), dtype=jnp.float32)
    w2d = jax.random.normal(k5, (32, 24), dtype=jnp.float32)
    out_2d = pallas_matmul(x2d, w2d)
    jax.block_until_ready(out_2d)
    ok &= bool(jnp.allclose(out_2d, jnp.matmul(x2d, w2d), atol=1e-5, rtol=1e-5))

    # Vector-matrix case: (K,) x (K, N) -> (N,).
    v = jax.random.normal(k6, (32,), dtype=jnp.float32)
    out_v = pallas_matmul(v, w2d)
    jax.block_until_ready(out_v)
    ok &= bool(jnp.allclose(out_v, jnp.matmul(v, w2d), atol=1e-5, rtol=1e-5))

    assert ok, "Pallas matmul mismatch vs jnp.matmul reference"
    print("KERNEL_OK")
</pallas_src>

<mosaic_0001>
module attributes {stable_mosaic.version = 11 : i64} {
  func.func @_mm_kernel_direct(%arg0: i32, %arg1: i32, %arg2: i32, %arg3: memref<8x8x32xf32, #tpu.memory_space<vmem>>, %arg4: memref<8x32x8xf32, #tpu.memory_space<vmem>>, %arg5: memref<8x8x8xf32, #tpu.memory_space<vmem>>) attributes {dimension_semantics = [#tpu.dimension_semantics<parallel>, #tpu.dimension_semantics<parallel>, #tpu.dimension_semantics<parallel>], iteration_bounds = array<i64: 1, 1, 1>, scalar_prefetch = 0 : i64, scratch_operands = 0 : i64, tpu.core_type = #tpu.core_type<tc>, window_params = [{transform_indices = @transform_0, window_bounds = array<i64: 8, 8, 32>}, {transform_indices = @transform_1, window_bounds = array<i64: 8, 32, 8>}, {transform_indices = @transform_2, window_bounds = array<i64: 8, 8, 8>}]} {
    %c0 = arith.constant 0 : index
    %c0_0 = arith.constant 0 : index
    %c0_1 = arith.constant 0 : index
    %0 = vector.load %arg3[%c0, %c0_0, %c0_1] : memref<8x8x32xf32, #tpu.memory_space<vmem>>, vector<8x8x32xf32>
    %c0_2 = arith.constant 0 : index
    %c0_3 = arith.constant 0 : index
    %c0_4 = arith.constant 0 : index
    %1 = vector.load %arg4[%c0_2, %c0_3, %c0_4] : memref<8x32x8xf32, #tpu.memory_space<vmem>>, vector<8x32x8xf32>
    "tpu.trace_start"() <{level = 10 : i32, message = "bmk,bkn->bmn"}> : () -> ()
    %cst = arith.constant dense<0.000000e+00> : vector<8x8x8xf32>
    %2 = tpu.matmul %0, %1, %cst {dimension_numbers = #tpu.dot_dimension_numbers<[2], [1], [1], [2], [0, 0, 0, 1, 1, 2], [0], [0]>} : vector<8x8x32xf32>, vector<8x32x8xf32>, vector<8x8x8xf32> -> vector<8x8x8xf32>
    "tpu.trace_stop"() : () -> ()
    %c0_5 = arith.constant 0 : index
    %c0_6 = arith.constant 0 : index
    %c0_7 = arith.constant 0 : index
    %3 = vector.load %arg5[%c0_5, %c0_6, %c0_7] : memref<8x8x8xf32, #tpu.memory_space<vmem>>, vector<8x8x8xf32>
    tpu.vector_store %arg5[%c0_5, %c0_6, %c0_7], %2 {strides = array<i32>} : memref<8x8x8xf32, #tpu.memory_space<vmem>>, vector<8x8x8xf32>,
    return
  }
  func.func @transform_0(%arg0: i32, %arg1: i32, %arg2: i32) -> (i32, i32, i32) {
    %c0_i32 = arith.constant 0 : i32
    %c0_i32_0 = arith.constant 0 : i32
    return %arg0, %arg1, %c0_i32 : i32, i32, i32
  }
  func.func @transform_1(%arg0: i32, %arg1: i32, %arg2: i32) -> (i32, i32, i32) {
    %c0_i32 = arith.constant 0 : i32
    %c0_i32_0 = arith.constant 0 : i32
    return %arg0, %c0_i32, %arg2 : i32, i32, i32
  }
  func.func @transform_2(%arg0: i32, %arg1: i32, %arg2: i32) -> (i32, i32, i32) {
    %c0_i32 = arith.constant 0 : i32
    return %arg0, %arg1, %arg2 : i32, i32, i32
  }
}

</mosaic_0001>

<llo_original>
// kernel: pallas_matmul.1
$region0: #{pallas_matmul.1}
  #allocation0 [shape = 'u32[]', space=smem, size = 0x4, offset = 0x4, fixed_abs, tag = 'smem constant byte address 0x4 - core index']
  #allocation1 [shape = 'u32[144,128]{1,0:T(1,128)}', space=vmem, size = 0x12000, scoped, tag = 'internal scratch']
  %s0 = inlined_call_operand.vmem [shape: f32[8,8,32], index: 0, kind: input, shape index: {}]
  %s1 = inlined_call_operand.vmem [shape: f32[8,32,8], index: 1, kind: input, shape index: {}]
  %s2 = inlined_call_operand.hbm [shape: f32[8,8,8], index: 2, kind: output, shape index: {}]
  %s3 = sld [smem:[#allocation0]]
  $region18: #{pallas_matmul.1} parent=0
    _
  %s5 = ssub.s32 1, %s3
  %s6 = scalar_select 0, %s5, %s3
  $region1: #{pallas_matmul.1} parent=0
    #allocation2 [shape = 'u8[32768]{0}', space=vmem, size = 0x8000, scoped, tag = 'output window, operand 0, single buffered']
    #allocation3 [shape = 's32[1]{0}', space=sflag, size = 0x4, scoped, tag = 'scoped memory for pallas_matmul.1']
    %7 = vsyncpa [#allocation3], 0
    // Predicated region
    $region2: #{pallas_matmul.1} parent=1 // pred_check
      _
    $region3: #{pallas_matmul.1} parent=1 // pred_check_branch
      %9 = sbr.rel (0) target = $region5
    $region4: #{pallas_matmul.1} parent=1 // pred_region
      _
    $region5: #{pallas_matmul.1} parent=1 // pred_fallthru
      _
    // Predicated region
    $region6: #{pallas_matmul.1} parent=1 // pred_check
      _
    $region7: #{pallas_matmul.1} parent=1 // pred_check_branch
      %11 = sbr.rel (0) target = $region9
    $region8: #{pallas_matmul.1} parent=1 // pred_region
      _
    $region9: #{pallas_matmul.1} parent=1 // pred_fallthru
      _
    %v12 = vld [vmem:[%s0] sm:$0xff]
    %v13 = vld [vmem:[%s0 + $0x8] sm:$0xff]
    %v14 = vld [vmem:[%s0 + $0x10] sm:$0xff]
    %v15 = vld [vmem:[%s0 + $0x18] sm:$0xff]
    %v16 = vld [vmem:[%s0 + $0x20] sm:$0xff]
    %v17 = vld [vmem:[%s0 + $0x28] sm:$0xff]
    %v18 = vld [vmem:[%s0 + $0x30] sm:$0xff]
    %v19 = vld [vmem:[%s0 + $0x38] sm:$0xff]
    %v20 = vld [vmem:[%s1] sm:$0xff]
    %v21 = vld [vmem:[%s1 + $0x8] sm:$0xff]
    %v22 = vld [vmem:[%s1 + $0x10] sm:$0xff]
    %v23 = vld [vmem:[%s1 + $0x18] sm:$0xff]
    %v24 = vld [vmem:[%s1 + $0x20] sm:$0xff]
    %v25 = vld [vmem:[%s1 + $0x28] sm:$0xff]
    %v26 = vld [vmem:[%s1 + $0x30] sm:$0xff]
    %v27 = vld [vmem:[%s1 + $0x38] sm:$0xff]
    %v28 = vld [vmem:[%s1 + $0x40] sm:$0xff]
    %v29 = vld [vmem:[%s1 + $0x48] sm:$0xff]
    %v30 = vld [vmem:[%s1 + $0x50] sm:$0xff]
    %v31 = vld [vmem:[%s1 + $0x58] sm:$0xff]
    %v32 = vld [vmem:[%s1 + $0x60] sm:$0xff]
    %v33 = vld [vmem:[%s1 + $0x68] sm:$0xff]
    %v34 = vld [vmem:[%s1 + $0x70] sm:$0xff]
    %v35 = vld [vmem:[%s1 + $0x78] sm:$0xff]
    %v36 = vld [vmem:[%s1 + $0x80] sm:$0xff]
    %v37 = vld [vmem:[%s1 + $0x88] sm:$0xff]
    %v38 = vld [vmem:[%s1 + $0x90] sm:$0xff]
    %v39 = vld [vmem:[%s1 + $0x98] sm:$0xff]
    %v40 = vld [vmem:[%s1 + $0xa0] sm:$0xff]
    %v41 = vld [vmem:[%s1 + $0xa8] sm:$0xff]
    %v42 = vld [vmem:[%s1 + $0xb0] sm:$0xff]
    %v43 = vld [vmem:[%s1 + $0xb8] sm:$0xff]
    %v44 = vld [vmem:[%s1 + $0xc0] sm:$0xff]
    %v45 = vld [vmem:[%s1 + $0xc8] sm:$0xff]
    %v46 = vld [vmem:[%s1 + $0xd0] sm:$0xff]
    %v47 = vld [vmem:[%s1 + $0xd8] sm:$0xff]
    %v48 = vld [vmem:[%s1 + $0xe0] sm:$0xff]
    %v49 = vld [vmem:[%s1 + $0xe8] sm:$0xff]
    %v50 = vld [vmem:[%s1 + $0xf0] sm:$0xff]
    %v51 = vld [vmem:[%s1 + $0xf8] sm:$0xff]
    %vm52 = vcmask 261120
    %v54 = vsel %vm52, %v12, 0
    %56 = vmatprep.subr.mxu0 0.0
    %57 = vmatpush1.msra.mxu0 %v20
    %58 = vmatprep.subr.mxu0 0.0
    %59 = vmatpush1.msra.mxu0 %v21
    %60 = vmatprep.subr.mxu0 0.0
    %61 = vmatpush1.msra.mxu0 %v22
    %62 = vmatprep.subr.mxu0 0.0
    %63 = vmatpush1.msra.mxu0 %v23
    %64 = vmatprep.subr.mxu0 0.0
    %65 = vmatpush1.msra.mxu0 0.0
    %66 = vmatprep.subr.mxu0 0.0
    %67 = vmatpush1.msra.mxu0 0.0
    %68 = vmatprep.subr.mxu0 0.0
    %69 = vmatpush1.msra.mxu0 0.0
    %70 = vmatprep.subr.mxu0 0.0
    %71 = vmatpush1.msra.mxu0 0.0
    %72 = vmatprep.subr.mxu0 0.0
    %73 = vmatpush1.msra.mxu0 0.0
    %74 = vmatprep.subr.mxu0 0.0
    %75 = vmatpush1.msra.mxu0 0.0
    %76 = vmatprep.subr.mxu0 0.0
    %77 = vmatpush1.msra.mxu0 0.0
    %78 = vmatprep.subr.mxu0 0.0
    %79 = vmatpush1.msra.mxu0 0.0
    %80 = vmatprep.subr.mxu0 0.0
    %81 = vmatpush1.msra.mxu0 0.0
    %82 = vmatprep.subr.mxu0 0.0
    %83 = vmatpush1.msra.mxu0 0.0
    %84 = vmatprep.subr.mxu0 0.0
    %85 = vmatpush1.msra.mxu0 0.0
    %86 = vmatprep.subr.mxu0 0.0
    %87 = vmatpush1.msra.mxu0 0.0
    %88 = vmatprep.subr.mxu0 0.0
    %89 = vmatpush1.msra.mxu0 0.0
    %90 = vmatprep.subr.mxu0 0.0
    %91 = vmatpush1.msra.mxu0 0.0
    %92 = vmatprep.subr.mxu0 0.0
    %93 = vmatpush1.msra.mxu0 0.0
    %94 = vmatprep.subr.mxu0 0.0
    %95 = vmatpush1.msra.mxu0 0.0
    %96 = vmatprep.subr.mxu0 0.0
    %97 = vmatpush1.msra.mxu0 0.0
    %98 = vmatprep.subr.mxu0 0.0
    %99 = vmatpush1.msra.mxu0 0.0
    %100 = vmatprep.subr.mxu0 0.0
    %101 = vmatpush1.msra.mxu0 0.0
    %102 = vmatprep.subr.mxu0 0.0
    %103 = vmatpush1.msra.mxu0 0.0
    %104 = vmatprep.subr.mxu0 0.0
    %105 = vmatpush1.msra.mxu0 0.0
    %106 = vmatprep.subr.mxu0 0.0
    %107 = vmatpush1.msra.mxu0 0.0
    %108 = vmatprep.subr.mxu0 0.0
    %109 = vmatpush1.msra.mxu0 0.0
    %110 = vmatprep.subr.mxu0 0.0
    %111 = vmatpush1.msra.mxu0 0.0
    %112 = vmatprep.subr.mxu0 0.0
    %113 = vmatpush1.msra.mxu0 0.0
    %114 = vmatprep.subr.mxu0 0.0
    %115 = vmatpush1.msra.mxu0 0.0
    %116 = vmatprep.subr.mxu0 0.0
    %117 = vmatpush1.msra.mxu0 0.0
    %118 = vmatprep.subr.mxu0 0.0
    %119 = vmatpush1.msra.mxu0 0.0
    %120 = vmatprep.mubr.f32.mxu0 0.0
    %121 = vmatmul.mubr.f32.gmra.mrb[0].mxu0 %v54
    %v122 = vpop.f32.mrb[0].mxu0
    %v123 = vadd.f32 0.0, %v122
    %v124 = vpop.f32.mrb[0].mxu0
    %125 = vdwg.mxu0
    %v127 = vsel %vm52, %v13, 0
    %129 = vmatprep.subr.mxu0 0.0
    %130 = vmatpush1.msra.mxu0 %v24
    %131 = vmatprep.subr.mxu0 0.0
    %132 = vmatpush1.msra.mxu0 %v25
    %133 = vmatprep.subr.mxu0 0.0
    %134 = vmatpush1.msra.mxu0 %v26
    %135 = vmatprep.subr.mxu0 0.0
    %136 = vmatpush1.msra.mxu0 %v27
    %137 = vmatprep.subr.mxu0 0.0
    %138 = vmatpush1.msra.mxu0 0.0
    %139 = vmatprep.subr.mxu0 0.0
    %140 = vmatpush1.msra.mxu0 0.0
    %141 = vmatprep.subr.mxu0 0.0
    %142 = vmatpush1.msra.mxu0 0.0
    %143 = vmatprep.subr.mxu0 0.0
    %144 = vmatpush1.msra.mxu0 0.0
    %145 = vmatprep.subr.mxu0 0.0
    %146 = vmatpush1.msra.mxu0 0.0
    %147 = vmatprep.subr.mxu0 0.0
    %148 = vmatpush1.msra.mxu0 0.0
    %149 = vmatprep.subr.mxu0 0.0
    %150 = vmatpush1.msra.mxu0 0.0
    %151 = vmatprep.subr.mxu0 0.0
    %152 = vmatpush1.msra.mxu0 0.0
    %153 = vmatprep.subr.mxu0 0.0
    %154 = vmatpush1.msra.mxu0 0.0
    %155 = vmatprep.subr.mxu0 0.0
    %156 = vmatpush1.msra.mxu0 0.0
    %157 = vmatprep.subr.mxu0 0.0
    %158 = vmatpush1.msra.mxu0 0.0
    %159 = vmatprep.subr.mxu0 0.0
    %160 = vmatpush1.msra.mxu0 0.0
    %161 = vmatprep.subr.mxu0 0.0
    %162 = vmatpush1.msra.mxu0 0.0
    %163 = vmatprep.subr.mxu0 0.0
    %164 = vmatpush1.msra.mxu0 0.0
    %165 = vmatprep.subr.mxu0 0.0
    %166 = vmatpush1.msra.mxu0 0.0
    %167 = vmatprep.subr.mxu0 0.0
    %168 = vmatpush1.msra.mxu0 0.0
    %169 = vmatprep.subr.mxu0 0.0
    %170 = vmatpush1.msra.mxu0 0.0
    %171 = vmatprep.subr.mxu0 0.0
    %172 = vmatpush1.msra.mxu0 0.0
    %173 = vmatprep.subr.mxu0 0.0
    %174 = vmatpush1.msra.mxu0 0.0
    %175 = vmatprep.subr.mxu0 0.0
    %176 = vmatpush1.msra.mxu0 0.0
    %177 = vmatprep.subr.mxu0 0.0
    %178 = vmatpush1.msra.mxu0 0.0
    %179 = vmatprep.subr.mxu0 0.0
    %180 = vmatpush1.msra.mxu0 0.0
    %181 = vmatprep.subr.mxu0 0.0
    %182 = vmatpush1.msra.mxu0 0.0
    %183 = vmatprep.subr.mxu0 0.0
    %184 = vmatpush1.msra.mxu0 0.0
    %185 = vmatprep.subr.mxu0 0.0
    %186 = vmatpush1.msra.mxu0 0.0
    %187 = vmatprep.subr.mxu0 0.0
    %188 = vmatpush1.msra.mxu0 0.0
    %189 = vmatprep.subr.mxu0 0.0
    %190 = vmatpush1.msra.mxu0 0.0
    %191 = vmatprep.subr.mxu0 0.0
    %192 = vmatpush1.msra.mxu0 0.0
    %193 = vmatprep.mubr.f32.mxu0 0.0
    %194 = vmatmul.mubr.f32.gmra.mrb[0].mxu0 %v127
    %v195 = vpop.f32.mrb[0].mxu0
    %v196 = vadd.f32 0.0, %v195
    %v197 = vpop.f32.mrb[0].mxu0
    %198 = vdwg.mxu0
    %v200 = vsel %vm52, %v14, 0
    %202 = vmatprep.subr.mxu0 0.0
    %203 = vmatpush1.msra.mxu0 %v28
    %204 = vmatprep.subr.mxu0 0.0
    %205 = vmatpush1.msra.mxu0 %v29
    %206 = vmatprep.subr.mxu0 0.0
    %207 = vmatpush1.msra.mxu0 %v30
    %208 = vmatprep.subr.mxu0 0.0
    %209 = vmatpush1.msra.mxu0 %v31
    %210 = vmatprep.subr.mxu0 0.0
    %211 = vmatpush1.msra.mxu0 0.0
    %212 = vmatprep.subr.mxu0 0.0
    %213 = vmatpush1.msra.mxu0 0.0
    %214 = vmatprep.subr.mxu0 0.0
    %215 = vmatpush1.msra.mxu0 0.0
    %216 = vmatprep.subr.mxu0 0.0
    %217 = vmatpush1.msra.mxu0 0.0
    %218 = vmatprep.subr.mxu0 0.0
    %219 = vmatpush1.msra.mxu0 0.0
    %220 = vmatprep.subr.mxu0 0.0
    %221 = vmatpush1.msra.mxu0 0.0
    %222 = vmatprep.subr.mxu0 0.0
    %223 = vmatpush1.msra.mxu0 0.0
    %224 = vmatprep.subr.mxu0 0.0
    %225 = vmatpush1.msra.mxu0 0.0
    %226 = vmatprep.subr.mxu0 0.0
    %227 = vmatpush1.msra.mxu0 0.0
    %228 = vmatprep.subr.mxu0 0.0
    %229 = vmatpush1.msra.mxu0 0.0
    %230 = vmatprep.subr.mxu0 0.0
    %231 = vmatpush1.msra.mxu0 0.0
    %232 = vmatprep.subr.mxu0 0.0
    %233 = vmatpush1.msra.mxu0 0.0
    %234 = vmatprep.subr.mxu0 0.0
    %235 = vmatpush1.msra.mxu0 0.0
    %236 = vmatprep.subr.mxu0 0.0
    %237 = vmatpush1.msra.mxu0 0.0
    %238 = vmatprep.subr.mxu0 0.0
    %239 = vmatpush1.msra.mxu0 0.0
    %240 = vmatprep.subr.mxu0 0.0
    %241 = vmatpush1.msra.mxu0 0.0
    %242 = vmatprep.subr.mxu0 0.0
    %243 = vmatpush1.msra.mxu0 0.0
    %244 = vmatprep.subr.mxu0 0.0
    %245 = vmatpush1.msra.mxu0 0.0
    %246 = vmatprep.subr.mxu0 0.0
    %247 = vmatpush1.msra.mxu0 0.0
    %248 = vmatprep.subr.mxu0 0.0
    %249 = vmatpush1.msra.mxu0 0.0
    %250 = vmatprep.subr.mxu0 0.0
    %251 = vmatpush1.msra.mxu0 0.0
    %252 = vmatprep.subr.mxu0 0.0
    %253 = vmatpush1.msra.mxu0 0.0
    %254 = vmatprep.subr.mxu0 0.0
    %255 = vmatpush1.msra.mxu0 0.0
    %256 = vmatprep.subr.mxu0 0.0
    %257 = vmatpush1.msra.mxu0 0.0
    %258 = vmatprep.subr.mxu0 0.0
    %259 = vmatpush1.msra.mxu0 0.0
    %260 = vmatprep.subr.mxu0 0.0
    %261 = vmatpush1.msra.mxu0 0.0
    %262 = vmatprep.subr.mxu0 0.0
    %263 = vmatpush1.msra.mxu0 0.0
    %264 = vmatprep.subr.mxu0 0.0
    %265 = vmatpush1.msra.mxu0 0.0
    %266 = vmatprep.mubr.f32.mxu0 0.0
    %267 = vmatmul.mubr.f32.gmra.mrb[0].mxu0 %v200
    %v268 = vpop.f32.mrb[0].mxu0
    %v269 = vadd.f32 0.0, %v268
    %v270 = vpop.f32.mrb[0].mxu0
    %271 = vdwg.mxu0
    %v273 = vsel %vm52, %v15, 0
    %275 = vmatprep.subr.mxu0 0.0
    %276 = vmatpush1.msra.mxu0 %v32
    %277 = vmatprep.subr.mxu0 0.0
    %278 = vmatpush1.msra.mxu0 %v33
    %279 = vmatprep.subr.mxu0 0.0
    %280 = vmatpush1.msra.mxu0 %v34
    %281 = vmatprep.subr.mxu0 0.0
    %282 = vmatpush1.msra.mxu0 %v35
    %283 = vmatprep.subr.mxu0 0.0
    %284 = vmatpush1.msra.mxu0 0.0
    %285 = vmatprep.subr.mxu0 0.0
    %286 = vmatpush1.msra.mxu0 0.0
    %287 = vmatprep.subr.mxu0 0.0
    %288 = vmatpush1.msra.mxu0 0.0
    %289 = vmatprep.subr.mxu0 0.0
    %290 = vmatpush1.msra.mxu0 0.0
    %291 = vmatprep.subr.mxu0 0.0
    %292 = vmatpush1.msra.mxu0 0.0
    %293 = vmatprep.subr.mxu0 0.0
    %294 = vmatpush1.msra.mxu0 0.0
    %295 = vmatprep.subr.mxu0 0.0
    %296 = vmatpush1.msra.mxu0 0.0
    %297 = vmatprep.subr.mxu0 0.0
    %298 = vmatpush1.msra.mxu0 0.0
    %299 = vmatprep.subr.mxu0 0.0
    %300 = vmatpush1.msra.mxu0 0.0
    %301 = vmatprep.subr.mxu0 0.0
    %302 = vmatpush1.msra.mxu0 0.0
    %303 = vmatprep.subr.mxu0 0.0
    %304 = vmatpush1.msra.mxu0 0.0
    %305 = vmatprep.subr.mxu0 0.0
    %306 = vmatpush1.msra.mxu0 0.0
    %307 = vmatprep.subr.mxu0 0.0
    %308 = vmatpush1.msra.mxu0 0.0
    %309 = vmatprep.subr.mxu0 0.0
    %310 = vmatpush1.msra.mxu0 0.0
    %311 = vmatprep.subr.mxu0 0.0
    %312 = vmatpush1.msra.mxu0 0.0
    %313 = vmatprep.subr.mxu0 0.0
    %314 = vmatpush1.msra.mxu0 0.0
    %315 = vmatprep.subr.mxu0 0.0
    %316 = vmatpush1.msra.mxu0 0.0
    %317 = vmatprep.subr.mxu0 0.0
    %318 = vmatpush1.msra.mxu0 0.0
    %319 = vmatprep.subr.mxu0 0.0
    %320 = vmatpush1.msra.mxu0 0.0
    %321 = vmatprep.subr.mxu0 0.0
    %322 = vmatpush1.msra.mxu0 0.0
    %323 = vmatprep.subr.mxu0 0.0
    %324 = vmatpush1.msra.mxu0 0.0
    %325 = vmatprep.subr.mxu0 0.0
    %326 = vmatpush1.msra.mxu0 0.0
    %327 = vmatprep.subr.mxu0 0.0
    %328 = vmatpush1.msra.mxu0 0.0
    %329 = vmatprep.subr.mxu0 0.0
    %330 = vmatpush1.msra.mxu0 0.0
    %331 = vmatprep.subr.mxu0 0.0
    %332 = vmatpush1.msra.mxu0 0.0
    %333 = vmatprep.subr.mxu0 0.0
    %334 = vmatpush1.msra.mxu0 0.0
    %335 = vmatprep.subr.mxu0 0.0
    %336 = vmatpush1.msra.mxu0 0.0
    %337 = vmatprep.subr.mxu0 0.0
    %338 = vmatpush1.msra.mxu0 0.0
    %339 = vmatprep.mubr.f32.mxu0 0.0
    %340 = vmatmul.mubr.f32.gmra.mrb[0].mxu0 %v273
    %v341 = vpop.f32.mrb[0].mxu0
    %v342 = vadd.f32 0.0, %v341
    %v343 = vpop.f32.mrb[0].mxu0
    %344 = vdwg.mxu0
    %v346 = vsel %vm52, %v16, 0
    %348 = vmatprep.subr.mxu0 0.0
    %349 = vmatpush1.msra.mxu0 %v36
    %350 = vmatprep.subr.mxu0 0.0
    %351 = vmatpush1.msra.mxu0 %v37
    %352 = vmatprep.subr.mxu0 0.0
    %353 = vmatpush1.msra.mxu0 %v38
    %354 = vmatprep.subr.mxu0 0.0
    %355 = vmatpush1.msra.mxu0 %v39
    %356 = vmatprep.subr.mxu0 0.0
    %357 = vmatpush1.msra.mxu0 0.0
    %358 = vmatprep.subr.mxu0 0.0
    %359 = vmatpush1.msra.mxu0 0.0
    %360 = vmatprep.subr.mxu0 0.0
    %361 = vmatpush1.msra.mxu0 0.0
    %362 = vmatprep.subr.mxu0 0.0
    %363 = vmatpush1.msra.mxu0 0.0
    %364 = vmatprep.subr.mxu0 0.0
    %365 = vmatpush1.msra.mxu0 0.0
    %366 = vmatprep.subr.mxu0 0.0
    %367 = vmatpush1.msra.mxu0 0.0
    %368 = vmatprep.subr.mxu0 0.0
    %369 = vmatpush1.msra.mxu0 0.0
    %370 = vmatprep.subr.mxu0 0.0
    %371 = vmatpush1.msra.mxu0 0.0
    %372 = vmatprep.subr.mxu0 0.0
    %373 = vmatpush1.msra.mxu0 0.0
    %374 = vmatprep.subr.mxu0 0.0
    %375 = vmatpush1.msra.mxu0 0.0
    %376 = vmatprep.subr.mxu0 0.0
    %377 = vmatpush1.msra.mxu0 0.0
    %378 = vmatprep.subr.mxu0 0.0
    %379 = vmatpush1.msra.mxu0 0.0
    %380 = vmatprep.subr.mxu0 0.0
    %381 = vmatpush1.msra.mxu0 0.0
    %382 = vmatprep.subr.mxu0 0.0
    %383 = vmatpush1.msra.mxu0 0.0
    %384 = vmatprep.subr.mxu0 0.0
    %385 = vmatpush1.msra.mxu0 0.0
    %386 = vmatprep.subr.mxu0 0.0
    %387 = vmatpush1.msra.mxu0 0.0
    %388 = vmatprep.subr.mxu0 0.0
    %389 = vmatpush1.msra.mxu0 0.0
    %390 = vmatprep.subr.mxu0 0.0
    %391 = vmatpush1.msra.mxu0 0.0
    %392 = vmatprep.subr.mxu0 0.0
    %393 = vmatpush1.msra.mxu0 0.0
    %394 = vmatprep.subr.mxu0 0.0
    %395 = vmatpush1.msra.mxu0 0.0
    %396 = vmatprep.subr.mxu0 0.0
    %397 = vmatpush1.msra.mxu0 0.0
    %398 = vmatprep.subr.mxu0 0.0
    %399 = vmatpush1.msra.mxu0 0.0
    %400 = vmatprep.subr.mxu0 0.0
    %401 = vmatpush1.msra.mxu0 0.0
    %402 = vmatprep.subr.mxu0 0.0
    %403 = vmatpush1.msra.mxu0 0.0
    %404 = vmatprep.subr.mxu0 0.0
    %405 = vmatpush1.msra.mxu0 0.0
    %406 = vmatprep.subr.mxu0 0.0
    %407 = vmatpush1.msra.mxu0 0.0
    %408 = vmatprep.subr.mxu0 0.0
    %409 = vmatpush1.msra.mxu0 0.0
    %410 = vmatprep.subr.mxu0 0.0
    %411 = vmatpush1.msra.mxu0 0.0
    %412 = vmatprep.mubr.f32.mxu0 0.0
    %413 = vmatmul.mubr.f32.gmra.mrb[0].mxu0 %v346
    %v414 = vpop.f32.mrb[0].mxu0
    %v415 = vadd.f32 0.0, %v414
    %v416 = vpop.f32.mrb[0].mxu0
    %417 = vdwg.mxu0
    %v419 = vsel %vm52, %v17, 0
    %421 = vmatprep.subr.mxu0 0.0
    %422 = vmatpush1.msra.mxu0 %v40
    %423 = vmatprep.subr.mxu0 0.0
    %424 = vmatpush1.msra.mxu0 %v41
    %425 = vmatprep.subr.mxu0 0.0
    %426 = vmatpush1.msra.mxu0 %v42
    %427 = vmatprep.subr.mxu0 0.0
    %428 = vmatpush1.msra.mxu0 %v43
    %429 = vmatprep.subr.mxu0 0.0
    %430 = vmatpush1.msra.mxu0 0.0
    %431 = vmatprep.subr.mxu0 0.0
    %432 = vmatpush1.msra.mxu0 0.0
    %433 = vmatprep.subr.mxu0 0.0
    %434 = vmatpush1.msra.mxu0 0.0
    %435 = vmatprep.subr.mxu0 0.0
    %436 = vmatpush1.msra.mxu0 0.0
    %437 = vmatprep.subr.mxu0 0.0
    %438 = vmatpush1.msra.mxu0 0.0
    %439 = vmatprep.subr.mxu0 0.0
    %440 = vmatpush1.msra.mxu0 0.0
    %441 = vmatprep.subr.mxu0 0.0
    %442 = vmatpush1.msra.mxu0 0.0
    %443 = vmatprep.subr.mxu0 0.0
    %444 = vmatpush1.msra.mxu0 0.0
    %445 = vmatprep.subr.mxu0 0.0
    %446 = vmatpush1.msra.mxu0 0.0
    %447 = vmatprep.subr.mxu0 0.0
    %448 = vmatpush1.msra.mxu0 0.0
    %449 = vmatprep.subr.mxu0 0.0
    %450 = vmatpush1.msra.mxu0 0.0
    %451 = vmatprep.subr.mxu0 0.0
    %452 = vmatpush1.msra.mxu0 0.0
    %453 = vmatprep.subr.mxu0 0.0
    %454 = vmatpush1.msra.mxu0 0.0
    %455 = vmatprep.subr.mxu0 0.0
    %456 = vmatpush1.msra.mxu0 0.0
    %457 = vmatprep.subr.mxu0 0.0
    %458 = vmatpush1.msra.mxu0 0.0
    %459 = vmatprep.subr.mxu0 0.0
    %460 = vmatpush1.msra.mxu0 0.0
    %461 = vmatprep.subr.mxu0 0.0
    %462 = vmatpush1.msra.mxu0 0.0
    %463 = vmatprep.subr.mxu0 0.0
    %464 = vmatpush1.msra.mxu0 0.0
    %465 = vmatprep.subr.mxu0 0.0
    %466 = vmatpush1.msra.mxu0 0.0
    %467 = vmatprep.subr.mxu0 0.0
    %468 = vmatpush1.msra.mxu0 0.0
    %469 = vmatprep.subr.mxu0 0.0
    %470 = vmatpush1.msra.mxu0 0.0
    %471 = vmatprep.subr.mxu0 0.0
    %472 = vmatpush1.msra.mxu0 0.0
    %473 = vmatprep.subr.mxu0 0.0
    %474 = vmatpush1.msra.mxu0 0.0
    %475 = vmatprep.subr.mxu0 0.0
    %476 = vmatpush1.msra.mxu0 0.0
    %477 = vmatprep.subr.mxu0 0.0
    %478 = vmatpush1.msra.mxu0 0.0
    %479 = vmatprep.subr.mxu0 0.0
    %480 = vmatpush1.msra.mxu0 0.0
    %481 = vmatprep.subr.mxu0 0.0
    %482 = vmatpush1.msra.mxu0 0.0
    %483 = vmatprep.subr.mxu0 0.0
    %484 = vmatpush1.msra.mxu0 0.0
    %485 = vmatprep.mubr.f32.mxu0 0.0
    %486 = vmatmul.mubr.f32.gmra.mrb[0].mxu0 %v419
    %v487 = vpop.f32.mrb[0].mxu0
    %v488 = vadd.f32 0.0, %v487
    %v489 = vpop.f32.mrb[0].mxu0
    %490 = vdwg.mxu0
    %v492 = vsel %vm52, %v18, 0
    %494 = vmatprep.subr.mxu0 0.0
    %495 = vmatpush1.msra.mxu0 %v44
    %496 = vmatprep.subr.mxu0 0.0
    %497 = vmatpush1.msra.mxu0 %v45
    %498 = vmatprep.subr.mxu0 0.0
    %499 = vmatpush1.msra.mxu0 %v46
    %500 = vmatprep.subr.mxu0 0.0
    %501 = vmatpush1.msra.mxu0 %v47
    %502 = vmatprep.subr.mxu0 0.0
    %503 = vmatpush1.msra.mxu0 0.0
    %504 = vmatprep.subr.mxu0 0.0
    %505 = vmatpush1.msra.mxu0 0.0
    %506 = vmatprep.subr.mxu0 0.0
    %507 = vmatpush1.msra.mxu0 0.0
    %508 = vmatprep.subr.mxu0 0.0
    %509 = vmatpush1.msra.mxu0 0.0
    %510 = vmatprep.subr.mxu0 0.0
    %511 = vmatpush1.msra.mxu0 0.0
    %512 = vmatprep.subr.mxu0 0.0
    %513 = vmatpush1.msra.mxu0 0.0
    %514 = vmatprep.subr.mxu0 0.0
    %515 = vmatpush1.msra.mxu0 0.0
    %516 = vmatprep.subr.mxu0 0.0
    %517 = vmatpush1.msra.mxu0 0.0
    %518 = vmatprep.subr.mxu0 0.0
    %519 = vmatpush1.msra.mxu0 0.0
    %520 = vmatprep.subr.mxu0 0.0
    %521 = vmatpush1.msra.mxu0 0.0
    %522 = vmatprep.subr.mxu0 0.0
    %523 = vmatpush1.msra.mxu0 0.0
    %524 = vmatprep.subr.mxu0 0.0
    %525 = vmatpush1.msra.mxu0 0.0
    %526 = vmatprep.subr.mxu0 0.0
    %527 = vmatpush1.msra.mxu0 0.0
    %528 = vmatprep.subr.mxu0 0.0
    %529 = vmatpush1.msra.mxu0 0.0
    %530 = vmatprep.subr.mxu0 0.0
    %531 = vmatpush1.msra.mxu0 0.0
    %532 = vmatprep.subr.mxu0 0.0
    %533 = vmatpush1.msra.mxu0 0.0
    %534 = vmatprep.subr.mxu0 0.0
    %535 = vmatpush1.msra.mxu0 0.0
    %536 = vmatprep.subr.mxu0 0.0
    %537 = vmatpush1.msra.mxu0 0.0
    %538 = vmatprep.subr.mxu0 0.0
    %539 = vmatpush1.msra.mxu0 0.0
    %540 = vmatprep.subr.mxu0 0.0
    %541 = vmatpush1.msra.mxu0 0.0
    %542 = vmatprep.subr.mxu0 0.0
    %543 = vmatpush1.msra.mxu0 0.0
    %544 = vmatprep.subr.mxu0 0.0
    %545 = vmatpush1.msra.mxu0 0.0
    %546 = vmatprep.subr.mxu0 0.0
    %547 = vmatpush1.msra.mxu0 0.0
    %548 = vmatprep.subr.mxu0 0.0
    %549 = vmatpush1.msra.mxu0 0.0
    %550 = vmatprep.subr.mxu0 0.0
    %551 = vmatpush1.msra.mxu0 0.0
    %552 = vmatprep.subr.mxu0 0.0
    %553 = vmatpush1.msra.mxu0 0.0
    %554 = vmatprep.subr.mxu0 0.0
    %555 = vmatpush1.msra.mxu0 0.0
    %556 = vmatprep.subr.mxu0 0.0
    %557 = vmatpush1.msra.mxu0 0.0
    %558 = vmatprep.mubr.f32.mxu0 0.0
    %559 = vmatmul.mubr.f32.gmra.mrb[0].mxu0 %v492
    %v560 = vpop.f32.mrb[0].mxu0
    %v561 = vadd.f32 0.0, %v560
    %v562 = vpop.f32.mrb[0].mxu0
    %563 = vdwg.mxu0
    %v565 = vsel %vm52, %v19, 0
    %567 = vmatprep.subr.mxu0 0.0
    %568 = vmatpush1.msra.mxu0 %v48
    %569 = vmatprep.subr.mxu0 0.0
    %570 = vmatpush1.msra.mxu0 %v49
    %571 = vmatprep.subr.mxu0 0.0
    %572 = vmatpush1.msra.mxu0 %v50
    %573 = vmatprep.subr.mxu0 0.0
    %574 = vmatpush1.msra.mxu0 %v51
    %575 = vmatprep.subr.mxu0 0.0
    %576 = vmatpush1.msra.mxu0 0.0
    %577 = vmatprep.subr.mxu0 0.0
    %578 = vmatpush1.msra.mxu0 0.0
    %579 = vmatprep.subr.mxu0 0.0
    %580 = vmatpush1.msra.mxu0 0.0
    %581 = vmatprep.subr.mxu0 0.0
    %582 = vmatpush1.msra.mxu0 0.0
    %583 = vmatprep.subr.mxu0 0.0
    %584 = vmatpush1.msra.mxu0 0.0
    %585 = vmatprep.subr.mxu0 0.0
    %586 = vmatpush1.msra.mxu0 0.0
    %587 = vmatprep.subr.mxu0 0.0
    %588 = vmatpush1.msra.mxu0 0.0
    %589 = vmatprep.subr.mxu0 0.0
    %590 = vmatpush1.msra.mxu0 0.0
    %591 = vmatprep.subr.mxu0 0.0
    %592 = vmatpush1.msra.mxu0 0.0
    %593 = vmatprep.subr.mxu0 0.0
    %594 = vmatpush1.msra.mxu0 0.0
    %595 = vmatprep.subr.mxu0 0.0
    %596 = vmatpush1.msra.mxu0 0.0
    %597 = vmatprep.subr.mxu0 0.0
    %598 = vmatpush1.msra.mxu0 0.0
    %599 = vmatprep.subr.mxu0 0.0
    %600 = vmatpush1.msra.mxu0 0.0
    %601 = vmatprep.subr.mxu0 0.0
    %602 = vmatpush1.msra.mxu0 0.0
    %603 = vmatprep.subr.mxu0 0.0
    %604 = vmatpush1.msra.mxu0 0.0
    %605 = vmatprep.subr.mxu0 0.0
    %606 = vmatpush1.msra.mxu0 0.0
    %607 = vmatprep.subr.mxu0 0.0
    %608 = vmatpush1.msra.mxu0 0.0
    %609 = vmatprep.subr.mxu0 0.0
    %610 = vmatpush1.msra.mxu0 0.0
    %611 = vmatprep.subr.mxu0 0.0
    %612 = vmatpush1.msra.mxu0 0.0
    %613 = vmatprep.subr.mxu0 0.0
    %614 = vmatpush1.msra.mxu0 0.0
    %615 = vmatprep.subr.mxu0 0.0
    %616 = vmatpush1.msra.mxu0 0.0
    %617 = vmatprep.subr.mxu0 0.0
    %618 = vmatpush1.msra.mxu0 0.0
    %619 = vmatprep.subr.mxu0 0.0
    %620 = vmatpush1.msra.mxu0 0.0
    %621 = vmatprep.subr.mxu0 0.0
    %622 = vmatpush1.msra.mxu0 0.0
    %623 = vmatprep.subr.mxu0 0.0
    %624 = vmatpush1.msra.mxu0 0.0
    %625 = vmatprep.subr.mxu0 0.0
    %626 = vmatpush1.msra.mxu0 0.0
    %627 = vmatprep.subr.mxu0 0.0
    %628 = vmatpush1.msra.mxu0 0.0
    %629 = vmatprep.subr.mxu0 0.0
    %630 = vmatpush1.msra.mxu0 0.0
    %631 = vmatprep.mubr.f32.mxu0 0.0
    %632 = vmatmul.mubr.f32.gmra.mrb[0].mxu0 %v565
    %v633 = vpop.f32.mrb[0].mxu0
    %v634 = vadd.f32 0.0, %v633
    %v635 = vpop.f32.mrb[0].mxu0
    %636 = vdwg.mxu0
    %vm637 = vcmask 64512
    %638 = vst.msk [vmem:[#allocation2] sm:$0xff] %vm637, %v123
    %639 = vst.msk [vmem:[#allocation2 + $0x8] sm:$0xff] %vm637, %v196
    %640 = vst.msk [vmem:[#allocation2 + $0x10] sm:$0xff] %vm637, %v269
    %641 = vst.msk [vmem:[#allocation2 + $0x18] sm:$0xff] %vm637, %v342
    %642 = vst.msk [vmem:[#allocation2 + $0x20] sm:$0xff] %vm637, %v415
    %643 = vst.msk [vmem:[#allocation2 + $0x28] sm:$0xff] %vm637, %v488
    %644 = vst.msk [vmem:[#allocation2 + $0x30] sm:$0xff] %vm637, %v561
    %645 = vst.msk [vmem:[#allocation2 + $0x38] sm:$0xff] %vm637, %v634
    // Predicated region
    $region10: #{pallas_matmul.1} parent=1 // pred_check
      _
    $region11: #{pallas_matmul.1} parent=1 // pred_check_branch
      %647 = sbr.rel (0) target = $region13
    $region12: #{pallas_matmul.1} parent=1 // pred_region
      %s649 = ssub.s32 1024, 1024
      %650 = vsyncadd [#allocation3], %s649
      %s651 = sshll.u32 [#allocation2], 4
      %s652 = int_to_ptr.vmem [resolvable:$true] %s651
      %657 = dma.vmem_to_hbm [thread:$0]  %s652, 1024, %s2, [#allocation3], 128, 128, 8
    $region13: #{pallas_matmul.1} parent=1 // pred_fallthru
      _
    // Predicated region
    $region14: #{pallas_matmul.1} parent=1 // pred_check
      _
    $region15: #{pallas_matmul.1} parent=1 // pred_check_branch
      %659 = sbr.rel (0) target = $region17
    $region16: #{pallas_matmul.1} parent=1 // pred_region
      %660 = dma.done [#allocation3], 1024
    $region17: #{pallas_matmul.1} parent=1 // pred_fallthru
      _
    %661 = vsyncpa [#allocation3], 1

</llo_original>
